<compile_context>
chip_gen: v5e
topology: v5e:2x2
jax: 0.10.0
libtpu: 0.0.40
codegen_flags: <defaults>
</compile_context>

<pallas_src>
import math

import jax
import jax.numpy as jnp
import numpy as np
from jax.experimental import pallas as pl
from jax.experimental.pallas import tpu as pltpu


def _round_up(x, m):
    return (x + m - 1) // m * m


def _choose_tile_b(batch, cap=4096):
    """Largest lane-dense batch tile (multiple of 128, <= cap).

    Per-step footprint at 4096 is only ~1-2 MiB (double-buffered bf16 u/i +
    int32 codes) plus a few MiB of f32 temporaries -- comfortably under the
    scoped VMEM budget on every generation (v5e default is raised to 32 MiB
    via vmem_limit_bytes; v6e 32 MiB; v7x 32 MiB scoped / 64 MiB physical),
    so no generation-specific tile shrink is needed.  If the whole batch fits
    in a single tile we halve it so the 1-D "parallel" grid has >= 2 steps and
    both TensorCores of a v7x chip are used (harmless on v5e/v6e)."""
    t = 128
    while t < min(batch, cap):
        t *= 2
    t = min(t, cap)
    if t >= 256 and batch <= t:
        t //= 2
    return t


# ----------------------------- Pallas kernel --------------------------------
def fm_kernel(bias_ref, u_ref, i_ref, code_ref, w_ref, mask_ref, out_ref):
    """Per batch tile (TB = TILE_B, batch on the lane axis everywhere):
         bias_ref : (1,) f32 in SMEM
         u_ref    : [Hc, TB]  bf16 user emb (row 0 = first-order, 1..H = 2nd)
         i_ref    : [Hc, TB]  bf16 item emb (same layout)
         code_ref : [nf, 1, TB] int32 raw feature codes
         w_ref    : [nf, Hc, Dp] f32 fused [w1 | w2] per field (resident)
         mask_ref : [nf, Dp, 1] int32 MSB-first bit masks per field (resident)
         out_ref  : [1, TB]   f32 sigmoid(logit), lane-dense store
    """
    u = u_ref[...].astype(jnp.float32)                       # [Hc, TB]
    v = i_ref[...].astype(jnp.float32)                       # [Hc, TB]

    # --- build the normalized multi-hot features in-kernel (VPU/EUP slots
    #     are otherwise idle; this removes the biggest HBM stream) ----------
    bits = jnp.bitwise_and(code_ref[...], mask_ref[...]) != 0    # [nf, Dp, TB]
    feat = bits.astype(jnp.float32)
    denom = jnp.sum(feat, axis=1, keepdims=True)                 # [nf, 1, TB]
    feat = feat * (1.0 / jnp.maximum(denom, 1.0))                # guard 0-codes

    # One batched MXU matmul: fused first/second-order projections per field.
    # (For large nf, accumulate per field instead of materializing e; nf=2.)
    e = jnp.einsum("nhd,ndb->nhb", w_ref[...], feat,
                   preferred_element_type=jnp.float32)           # [nf, Hc, TB]

    combined = u + v + jnp.sum(e, axis=0)                        # sum_f emb
    sumsq = u * u + v * v + jnp.sum(e * e, axis=0)               # sum_f emb^2
    diff = combined * combined - sumsq                           # [Hc, TB]

    # Row 0 = first-order term; rows 1..H = FM interaction.  Padding rows of
    # u/i/W are zero so diff is already 0 there -- a single [Hc, 1] column
    # mask (broadcast over lanes) is all that is needed.
    col = jax.lax.broadcasted_iota(jnp.int32, (combined.shape[0], 1), 0)
    fmask = (col == 0).astype(jnp.float32)                       # [Hc, 1]
    contrib = fmask * combined + (0.5 * (1.0 - fmask)) * diff
    logit = bias_ref[0] + jnp.sum(contrib, axis=0, keepdims=True)  # [1, TB]

    # Exact sigmoid (EUP exp + VPU divide); no approx-reciprocal error.
    out_ref[...] = 1.0 / (1.0 + jnp.exp(-logit))


def lfm_forward(x, params, feat_dim, hidden_dim):
    """x: int32 [B, 2 + n_feats].  Returns float32 [B] = sigmoid(FM(x))."""
    n_feats = len(feat_dim)
    B = x.shape[0]
    H = hidden_dim
    Hc = _round_up(1 + H, 8)                                   # sublane pad of 1+H
    Dp = _round_up(max(feat_dim) if n_feats else 1, 8)         # sublane pad of Dmax
    TILE_B = _choose_tile_b(B)
    B_pad = _round_up(B, TILE_B)
    nf = max(n_feats, 1)

    # --- glue: feature-major embedding tables built once (tiny), then gather
    #     columns so activations come out already [Hc, B] -- no batch-sized
    #     relayout pass in the wrapper.  Streamed operands are bf16. ---------
    user_tab = jnp.concatenate([params["first_user"], params["second_user"]], axis=1)
    item_tab = jnp.concatenate([params["first_item"], params["second_item"]], axis=1)
    user_tab = jnp.pad(user_tab, ((0, 0), (0, Hc - 1 - H))).T.astype(jnp.bfloat16)
    item_tab = jnp.pad(item_tab, ((0, 0), (0, Hc - 1 - H))).T.astype(jnp.bfloat16)

    u_all = jnp.pad(user_tab[:, x[:, 0]], ((0, 0), (0, B_pad - B)))   # [Hc, B_pad] bf16
    i_all = jnp.pad(item_tab[:, x[:, 1]], ((0, 0), (0, B_pad - B)))   # [Hc, B_pad] bf16

    if n_feats:
        codes = jnp.pad(x[:, 2:].T.astype(jnp.int32), ((0, 0), (0, B_pad - B)))
        codes = codes[:, None, :]                                      # [nf, 1, B_pad]
        mask_np = np.zeros((nf, Dp), np.int32)
        ws = []
        for i in range(n_feats):
            d = feat_dim[i]
            mask_np[i, :d] = 2 ** np.arange(d - 1, -1, -1)             # MSB-first
            w = jnp.concatenate([params["w1"][i], params["w2"][i]], axis=1)  # [d, 1+H]
            ws.append(jnp.pad(w, ((0, Dp - d), (0, Hc - 1 - H))).T)    # [Hc, Dp]
        bitmask = jnp.asarray(mask_np)[:, :, None]                     # [nf, Dp, 1]
        w_fused = jnp.stack(ws, axis=0).astype(jnp.float32)            # [nf, Hc, Dp]
    else:  # no feature fields: dummy zero field contributes nothing
        codes = jnp.zeros((1, 1, B_pad), jnp.int32)
        bitmask = jnp.zeros((1, Dp, 1), jnp.int32)
        w_fused = jnp.zeros((1, Hc, Dp), jnp.float32)

    bias = params["bias"].reshape((1,)).astype(jnp.float32)

    out = pl.pallas_call(
        fm_kernel,
        out_shape=jax.ShapeDtypeStruct((1, B_pad), jnp.float32),
        grid=(B_pad // TILE_B,),
        in_specs=[
            pl.BlockSpec(memory_space=pltpu.MemorySpace.SMEM),        # bias (scalar)
            pl.BlockSpec((Hc, TILE_B), lambda b: (0, b)),             # user emb (bf16)
            pl.BlockSpec((Hc, TILE_B), lambda b: (0, b)),             # item emb (bf16)
            pl.BlockSpec((nf, 1, TILE_B), lambda b: (0, 0, b)),       # int32 codes
            pl.BlockSpec((nf, Hc, Dp), lambda b: (0, 0, 0)),          # fused weights (resident)
            pl.BlockSpec((nf, Dp, 1), lambda b: (0, 0, 0)),           # bit masks (resident)
        ],
        out_specs=pl.BlockSpec((1, TILE_B), lambda b: (0, b)),        # lane-dense out
        compiler_params=pltpu.CompilerParams(
            dimension_semantics=("parallel",),
            vmem_limit_bytes=32 * 1024 * 1024),
    )(bias, u_all, i_all, codes, w_fused, bitmask)

    return out[0, :B]                                          # squeeze(1)


# ----------------------------- helpers ---------------------------------------
def binary_encode(x, bits):
    """MSB-first multi-hot encoding of integer x into `bits` dims, row-normalized
    (mirrors FM.binary; assumes x > 0 so the row sum is non-zero)."""
    mask = (2 ** jnp.arange(bits - 1, -1, -1)).astype(x.dtype)     # [bits]
    out = (jnp.bitwise_and(x[:, None], mask[None, :]) != 0).astype(jnp.float32)
    s = jnp.sum(out, axis=1, keepdims=True)
    return out / s


def xavier_uniform(key, shape):
    fan_out, fan_in = shape[0], shape[1]
    bound = math.sqrt(6.0 / (fan_in + fan_out))
    return jax.random.uniform(key, shape, jnp.float32, -bound, bound)


def init_params(key, n_users, n_items, feat_dim, hidden_dim):
    ks = jax.random.split(key, 4 + 2 * len(feat_dim))
    params = {
        "bias": jnp.zeros((1,), jnp.float32),
        "first_user": xavier_uniform(ks[0], (n_users, 1)),
        "first_item": xavier_uniform(ks[1], (n_items, 1)),
        "second_user": xavier_uniform(ks[2], (n_users, hidden_dim)),
        "second_item": xavier_uniform(ks[3], (n_items, hidden_dim)),
        # nn.Linear(in, out, bias=False) weight is (out, in); store transposed
        # (in, out) so the math is  f @ W.
        "w1": [xavier_uniform(ks[4 + 2 * i], (1, feat_dim[i])).T
               for i in range(len(feat_dim))],
        "w2": [xavier_uniform(ks[5 + 2 * i], (hidden_dim, feat_dim[i])).T
               for i in range(len(feat_dim))],
    }
    return params


def lfm_reference(x, params, feat_dim, hidden_dim):
    """Plain-JAX (f32) reproduction of the PyTorch forward, for verification."""
    n_feats = len(feat_dim)
    u1 = params["first_user"][x[:, 0]]
    i1 = params["first_item"][x[:, 1]]
    feats = [binary_encode(x[:, i + 2], feat_dim[i]) for i in range(n_feats)]
    f1 = jnp.concatenate([f @ w for f, w in zip(feats, params["w1"])], axis=1)
    first = jnp.sum(jnp.concatenate([u1, i1, f1], axis=1), axis=1, keepdims=True)
    out = params["bias"] + first
    u2 = params["second_user"][x[:, 0]][:, None, :]
    i2 = params["second_item"][x[:, 1]][:, None, :]
    f2 = jnp.stack([f @ w for f, w in zip(feats, params["w2"])], axis=1)
    emb = jnp.concatenate([u2, i2, f2], axis=1)
    sos = jnp.sum(emb, axis=1) ** 2
    ssq = jnp.sum(emb ** 2, axis=1)
    second = 0.5 * jnp.sum(sos - ssq, axis=1, keepdims=True)
    logit = (out + second)[:, 0]
    return jnp.exp(logit) / (1 + jnp.exp(logit))


# ----------------------------- main ------------------------------------------
if __name__ == "__main__":
    n_users, n_items = 40, 60
    feat_dim = [5, 7]
    hidden_dim = 32
    B = 8

    key = jax.random.PRNGKey(0)
    kp, ku, ki, kf1, kf2 = jax.random.split(key, 5)

    params = init_params(kp, n_users, n_items, feat_dim, hidden_dim)

    # x: [B, 2 + n_feats] int32; feature codes > 0 so the multi-hot row sum != 0
    x = jnp.stack(
        [
            jax.random.randint(ku, (B,), 0, n_users),
            jax.random.randint(ki, (B,), 0, n_items),
            jax.random.randint(kf1, (B,), 1, 2 ** feat_dim[0]),
            jax.random.randint(kf2, (B,), 1, 2 ** feat_dim[1]),
        ],
        axis=1,
    ).astype(jnp.int32)

    y = lfm_forward(x, params, feat_dim, hidden_dim)
    y = jax.block_until_ready(y)

    y_ref = lfm_reference(x, params, feat_dim, hidden_dim)
    assert y.shape == (B,)
    # Streamed embeddings are bf16 (MXU accumulates in f32), so compare the
    # output probabilities at 1e-2 against the pure-f32 reference.
    np.testing.assert_allclose(np.asarray(y), np.asarray(y_ref),
                               rtol=1e-2, atol=1e-2)
    print("KERNEL_OK")
</pallas_src>

<mosaic_0001>
module attributes {stable_mosaic.version = 11 : i64} {
  func.func @fm_kernel(%arg0: i32, %arg1: memref<1xf32, #tpu.memory_space<smem>>, %arg2: memref<40x128xbf16, #tpu.memory_space<vmem>>, %arg3: memref<40x128xbf16, #tpu.memory_space<vmem>>, %arg4: memref<2x1x128xi32, #tpu.memory_space<vmem>>, %arg5: memref<2x40x8xf32, #tpu.memory_space<vmem>>, %arg6: memref<2x8x1xi32, #tpu.memory_space<vmem>>, %arg7: memref<1x128xf32, #tpu.memory_space<vmem>>) attributes {dimension_semantics = [#tpu.dimension_semantics<parallel>], iteration_bounds = array<i64: 1>, scalar_prefetch = 0 : i64, scratch_operands = 0 : i64, tpu.core_type = #tpu.core_type<tc>, window_params = [{transform_indices = @transform_0, window_bounds = array<i64: 1>}, {transform_indices = @transform_1, window_bounds = array<i64: 40, 128>}, {transform_indices = @transform_2, window_bounds = array<i64: 40, 128>}, {transform_indices = @transform_3, window_bounds = array<i64: 2, 1, 128>}, {pipeline_mode = #tpu.pipeline_mode<synchronous>, transform_indices = @transform_4, window_bounds = array<i64: 2, 40, 8>}, {pipeline_mode = #tpu.pipeline_mode<synchronous>, transform_indices = @transform_5, window_bounds = array<i64: 2, 8, 1>}, {transform_indices = @transform_6, window_bounds = array<i64: 1, 128>}]} {
    %c0 = arith.constant 0 : index
    %c0_0 = arith.constant 0 : index
    %0 = vector.load %arg2[%c0, %c0_0] : memref<40x128xbf16, #tpu.memory_space<vmem>>, vector<40x128xbf16>
    %1 = arith.extf %0 : vector<40x128xbf16> to vector<40x128xf32>
    %c0_1 = arith.constant 0 : index
    %c0_2 = arith.constant 0 : index
    %2 = vector.load %arg3[%c0_1, %c0_2] : memref<40x128xbf16, #tpu.memory_space<vmem>>, vector<40x128xbf16>
    %3 = arith.extf %2 : vector<40x128xbf16> to vector<40x128xf32>
    %c0_3 = arith.constant 0 : index
    %c0_4 = arith.constant 0 : index
    %c0_5 = arith.constant 0 : index
    %4 = vector.load %arg4[%c0_3, %c0_4, %c0_5] : memref<2x1x128xi32, #tpu.memory_space<vmem>>, vector<2x1x128xi32>
    %c0_6 = arith.constant 0 : index
    %c0_7 = arith.constant 0 : index
    %c0_8 = arith.constant 0 : index
    %5 = vector.load %arg6[%c0_6, %c0_7, %c0_8] : memref<2x8x1xi32, #tpu.memory_space<vmem>>, vector<2x8x1xi32>
    %6 = vector.broadcast %4 : vector<2x1x128xi32> to vector<2x8x128xi32>
    %7 = vector.broadcast %5 : vector<2x8x1xi32> to vector<2x8x128xi32>
    %8 = arith.andi %6, %7 : vector<2x8x128xi32>
    %c0_i32 = arith.constant 0 : i32
    %9 = vector.broadcast %c0_i32 : i32 to vector<2x8x128xi32>
    %10 = arith.cmpi ne, %8, %9 : vector<2x8x128xi32>
    %11 = arith.extui %10 : vector<2x8x128xi1> to vector<2x8x128xi32>
    %12 = arith.sitofp %11 : vector<2x8x128xi32> to vector<2x8x128xf32>
    %cst = arith.constant dense<0.000000e+00> : vector<2x128xf32>
    %13 = vector.multi_reduction <add>, %12, %cst [1] : vector<2x8x128xf32> to vector<2x128xf32>
    %14 = vector.shape_cast %13 : vector<2x128xf32> to vector<2x1x128xf32>
    %cst_9 = arith.constant 1.000000e+00 : f32
    %15 = vector.broadcast %cst_9 : f32 to vector<2x1x128xf32>
    %16 = arith.maximumf %14, %15 : vector<2x1x128xf32>
    %cst_10 = arith.constant 1.000000e+00 : f32
    %17 = vector.broadcast %cst_10 : f32 to vector<2x1x128xf32>
    %18 = arith.divf %17, %16 : vector<2x1x128xf32>
    %19 = vector.broadcast %18 : vector<2x1x128xf32> to vector<2x8x128xf32>
    %20 = arith.mulf %12, %19 : vector<2x8x128xf32>
    %c0_11 = arith.constant 0 : index
    %c0_12 = arith.constant 0 : index
    %c0_13 = arith.constant 0 : index
    %21 = vector.load %arg5[%c0_11, %c0_12, %c0_13] : memref<2x40x8xf32, #tpu.memory_space<vmem>>, vector<2x40x8xf32>
    "tpu.trace_start"() <{level = 10 : i32, message = "nhd,ndb->nhb"}> : () -> ()
    %cst_14 = arith.constant dense<0.000000e+00> : vector<2x40x128xf32>
    %22 = tpu.matmul %21, %20, %cst_14 {dimension_numbers = #tpu.dot_dimension_numbers<[2], [1], [1], [2], [0, 0, 0, 1, 1, 2], [0], [0]>} : vector<2x40x8xf32>, vector<2x8x128xf32>, vector<2x40x128xf32> -> vector<2x40x128xf32>
    "tpu.trace_stop"() : () -> ()
    %23 = arith.addf %1, %3 : vector<40x128xf32>
    %cst_15 = arith.constant dense<0.000000e+00> : vector<40x128xf32>
    %24 = vector.multi_reduction <add>, %22, %cst_15 [0] : vector<2x40x128xf32> to vector<40x128xf32>
    %25 = arith.addf %23, %24 : vector<40x128xf32>
    %26 = arith.mulf %1, %1 : vector<40x128xf32>
    %27 = arith.mulf %3, %3 : vector<40x128xf32>
    %28 = arith.addf %26, %27 : vector<40x128xf32>
    %29 = arith.mulf %22, %22 : vector<2x40x128xf32>
    %cst_16 = arith.constant dense<0.000000e+00> : vector<40x128xf32>
    %30 = vector.multi_reduction <add>, %29, %cst_16 [0] : vector<2x40x128xf32> to vector<40x128xf32>
    %31 = arith.addf %28, %30 : vector<40x128xf32>
    %32 = arith.mulf %25, %25 : vector<40x128xf32>
    %33 = arith.subf %32, %31 : vector<40x128xf32>
    %34 = tpu.iota {dimensions = array<i32: 0>} : vector<40x1xi32>
    %c0_i32_17 = arith.constant 0 : i32
    %35 = vector.broadcast %c0_i32_17 : i32 to vector<40x1xi32>
    %36 = arith.cmpi eq, %34, %35 : vector<40x1xi32>
    %37 = arith.extui %36 : vector<40x1xi1> to vector<40x1xi32>
    %38 = arith.sitofp %37 : vector<40x1xi32> to vector<40x1xf32>
    %39 = vector.broadcast %38 : vector<40x1xf32> to vector<40x128xf32>
    %40 = arith.mulf %39, %25 : vector<40x128xf32>
    %cst_18 = arith.constant 1.000000e+00 : f32
    %41 = vector.broadcast %cst_18 : f32 to vector<40x1xf32>
    %42 = arith.subf %41, %38 : vector<40x1xf32>
    %cst_19 = arith.constant 5.000000e-01 : f32
    %43 = vector.broadcast %cst_19 : f32 to vector<40x1xf32>
    %44 = arith.mulf %43, %42 : vector<40x1xf32>
    %45 = vector.broadcast %44 : vector<40x1xf32> to vector<40x128xf32>
    %46 = arith.mulf %45, %33 : vector<40x128xf32>
    %47 = arith.addf %40, %46 : vector<40x128xf32>
    %c0_20 = arith.constant 0 : index
    %48 = memref.load %arg1[%c0_20] : memref<1xf32, #tpu.memory_space<smem>>
    %cst_21 = arith.constant dense<0.000000e+00> : vector<128xf32>
    %49 = vector.multi_reduction <add>, %47, %cst_21 [0] : vector<40x128xf32> to vector<128xf32>
    %50 = vector.shape_cast %49 : vector<128xf32> to vector<1x128xf32>
    %51 = vector.broadcast %48 : f32 to vector<1x128xf32>
    %52 = arith.addf %51, %50 : vector<1x128xf32>
    %cst_22 = arith.constant 0.000000e+00 : f32
    %53 = vector.broadcast %cst_22 : f32 to vector<1x128xf32>
    %54 = arith.subf %53, %52 : vector<1x128xf32>
    %55 = math.exp %54 : vector<1x128xf32>
    %cst_23 = arith.constant 1.000000e+00 : f32
    %56 = vector.broadcast %cst_23 : f32 to vector<1x128xf32>
    %57 = arith.addf %56, %55 : vector<1x128xf32>
    %cst_24 = arith.constant 1.000000e+00 : f32
    %58 = vector.broadcast %cst_24 : f32 to vector<1x128xf32>
    %59 = arith.divf %58, %57 : vector<1x128xf32>
    %c0_25 = arith.constant 0 : index
    %c0_26 = arith.constant 0 : index
    %60 = vector.load %arg7[%c0_25, %c0_26] : memref<1x128xf32, #tpu.memory_space<vmem>>, vector<1x128xf32>
    tpu.vector_store %arg7[%c0_25, %c0_26], %59 {strides = array<i32>} : memref<1x128xf32, #tpu.memory_space<vmem>>, vector<1x128xf32>,
    return
  }
  func.func @transform_0(%arg0: i32) -> i32 {
    %c0_i32 = arith.constant 0 : i32
    %c0_i32_0 = arith.constant 0 : i32
    return %c0_i32 : i32
  }
  func.func @transform_1(%arg0: i32) -> (i32, i32) {
    %c0_i32 = arith.constant 0 : i32
    %c0_i32_0 = arith.constant 0 : i32
    return %c0_i32, %arg0 : i32, i32
  }
  func.func @transform_2(%arg0: i32) -> (i32, i32) {
    %c0_i32 = arith.constant 0 : i32
    %c0_i32_0 = arith.constant 0 : i32
    return %c0_i32, %arg0 : i32, i32
  }
  func.func @transform_3(%arg0: i32) -> (i32, i32, i32) {
    %c0_i32 = arith.constant 0 : i32
    %c0_i32_0 = arith.constant 0 : i32
    %c0_i32_1 = arith.constant 0 : i32
    return %c0_i32, %c0_i32_0, %arg0 : i32, i32, i32
  }
  func.func @transform_4(%arg0: i32) -> (i32, i32, i32) {
    %c0_i32 = arith.constant 0 : i32
    %c0_i32_0 = arith.constant 0 : i32
    %c0_i32_1 = arith.constant 0 : i32
    %c0_i32_2 = arith.constant 0 : i32
    return %c0_i32, %c0_i32_0, %c0_i32_1 : i32, i32, i32
  }
  func.func @transform_5(%arg0: i32) -> (i32, i32, i32) {
    %c0_i32 = arith.constant 0 : i32
    %c0_i32_0 = arith.constant 0 : i32
    %c0_i32_1 = arith.constant 0 : i32
    %c0_i32_2 = arith.constant 0 : i32
    return %c0_i32, %c0_i32_0, %c0_i32_1 : i32, i32, i32
  }
  func.func @transform_6(%arg0: i32) -> (i32, i32) {
    %c0_i32 = arith.constant 0 : i32
    %c0_i32_0 = arith.constant 0 : i32
    return %c0_i32, %arg0 : i32, i32
  }
}

</mosaic_0001>

<llo_original>
// kernel: tpu_custom_call.1
$region0: #{tpu_custom_call.1}
  #allocation0 [shape = 'u32[]', space=smem, size = 0x4, offset = 0x4, fixed_abs, tag = 'smem constant byte address 0x4 - core index']
  #allocation1 [shape = 'u32[72,128]{1,0:T(1,128)}', space=vmem, size = 0x9000, scoped, tag = 'internal scratch']
  #allocation2 [shape = 'f32[1]{0:T(128)S(6)}', space=smem, size = 0x200, scoped, tag = 'scoped memory for tpu_custom_call.1']
  %s0 = inlined_call_operand.<no memory space> [shape: f32[1], index: 0, kind: input, shape index: {}]
  %s1 = inlined_call_operand.vmem [shape: bf16[40,128], index: 1, kind: input, shape index: {}]
  %s2 = inlined_call_operand.vmem [shape: bf16[40,128], index: 2, kind: input, shape index: {}]
  %s3 = inlined_call_operand.vmem [shape: s32[2,1,128], index: 3, kind: input, shape index: {}]
  %s4 = inlined_call_operand.vmem [shape: f32[2,40,8], index: 4, kind: input, shape index: {}]
  %s5 = inlined_call_operand.vmem [shape: s32[2,8,1], index: 5, kind: input, shape index: {}]
  %s6 = inlined_call_operand.hbm [shape: f32[1,128], index: 6, kind: output, shape index: {}]
  %s7 = sld [smem:[#allocation0]]
  $region34: #{tpu_custom_call.1} parent=0
    _
  %s9 = ssub.s32 1, %s7
  %s10 = scalar_select 0, %s9, %s7
  %11 = sst [smem:[#allocation2]] %s0
  $region1: #{tpu_custom_call.1} parent=0
    #allocation3 [shape = 'u8[512]{0}', space=vmem, size = 0x400, scoped, tag = 'output window, operand 0, single buffered']
    #allocation4 [shape = 's32[1]{0}', space=sflag, size = 0x4, scoped, tag = 'scoped memory for tpu_custom_call.1']
    %12 = vsyncpa [#allocation4], 0
    // Predicated region
    $region2: #{tpu_custom_call.1} parent=1 // pred_check
      _
    $region3: #{tpu_custom_call.1} parent=1 // pred_check_branch
      %14 = sbr.rel (0) target = $region5
    $region4: #{tpu_custom_call.1} parent=1 // pred_region
      _
    $region5: #{tpu_custom_call.1} parent=1 // pred_fallthru
      _
    // Predicated region
    $region6: #{tpu_custom_call.1} parent=1 // pred_check
      _
    $region7: #{tpu_custom_call.1} parent=1 // pred_check_branch
      %16 = sbr.rel (0) target = $region9
    $region8: #{tpu_custom_call.1} parent=1 // pred_region
      _
    $region9: #{tpu_custom_call.1} parent=1 // pred_fallthru
      _
    // Predicated region
    $region10: #{tpu_custom_call.1} parent=1 // pred_check
      _
    $region11: #{tpu_custom_call.1} parent=1 // pred_check_branch
      %18 = sbr.rel (0) target = $region13
    $region12: #{tpu_custom_call.1} parent=1 // pred_region
      _
    $region13: #{tpu_custom_call.1} parent=1 // pred_fallthru
      _
    // Predicated region
    $region14: #{tpu_custom_call.1} parent=1 // pred_check
      _
    $region15: #{tpu_custom_call.1} parent=1 // pred_check_branch
      %20 = sbr.rel (0) target = $region17
    $region16: #{tpu_custom_call.1} parent=1 // pred_region
      _
    $region17: #{tpu_custom_call.1} parent=1 // pred_fallthru
      _
    // Predicated region
    $region18: #{tpu_custom_call.1} parent=1 // pred_check
      _
    $region19: #{tpu_custom_call.1} parent=1 // pred_check_branch
      %22 = sbr.rel (0) target = $region21
    $region20: #{tpu_custom_call.1} parent=1 // pred_region
      _
    $region21: #{tpu_custom_call.1} parent=1 // pred_fallthru
      _
    // Predicated region
    $region22: #{tpu_custom_call.1} parent=1 // pred_check
      _
    $region23: #{tpu_custom_call.1} parent=1 // pred_check_branch
      %24 = sbr.rel (0) target = $region25
    $region24: #{tpu_custom_call.1} parent=1 // pred_region
      _
    $region25: #{tpu_custom_call.1} parent=1 // pred_fallthru
      _
    %v25 = vld [vmem:[%s1] sm:$0xf]
    %v26 = vld [vmem:[%s1 + $0x4] sm:$0xf]
    %v27 = vld [vmem:[%s1 + $0x8] sm:$0xf]
    %v28 = vld [vmem:[%s1 + $0xc] sm:$0xf]
    %v29 = vld [vmem:[%s1 + $0x10] sm:$0xf]
    %v30 = vunpack.c.l.bf16 %v25
    %v31 = vunpack.c.l.bf16 %v26
    %v32 = vunpack.c.l.bf16 %v27
    %v33 = vunpack.c.l.bf16 %v28
    %v34 = vunpack.c.l.bf16 %v29
    %v35 = vld [vmem:[%s2] sm:$0xf]
    %v36 = vld [vmem:[%s2 + $0x4] sm:$0xf]
    %v37 = vld [vmem:[%s2 + $0x8] sm:$0xf]
    %v38 = vld [vmem:[%s2 + $0xc] sm:$0xf]
    %v39 = vld [vmem:[%s2 + $0x10] sm:$0xf]
    %v40 = vunpack.c.l.bf16 %v35
    %v41 = vunpack.c.l.bf16 %v36
    %v42 = vunpack.c.l.bf16 %v37
    %v43 = vunpack.c.l.bf16 %v38
    %v44 = vunpack.c.l.bf16 %v39
    %v45 = vld [vmem:[%s3] sm:$0x1]
    %v46 = vld [vmem:[%s3 + $0x1] sm:$0x1]
    %v47 = vld [vmem:[%s5] sm:$0xff]
    %v48 = vld [vmem:[%s5 + $0x8] sm:$0xff]
    %v49 = vperm.slane %v45, 0
    %v50 = vperm.slane %v46, 0
    %51 = vset.pattern.permute.xlu0 0
    %52 = vperm.xlu0 %51, %v47
    %v53 = vpop.permute.xlu0 %52
    %54 = vset.pattern.permute.xlu0 0
    %55 = vperm.xlu0 %54, %v48
    %v56 = vpop.permute.xlu0 %55
    %v57 = vand.u32 %v49, %v53
    %v58 = vand.u32 %v50, %v56
    %vm59 = vcmp.ne.s32.totalorder %v57, 0
    %vm60 = vcmp.ne.s32.totalorder %v58, 0
    %v61 = vsel %vm59, 1, 0
    %v62 = vsel %vm60, 1, 0
    %v63 = vcvt.s32.f32 %v61
    %v64 = vcvt.s32.f32 %v62
    %v65 = vrot.slane %v63, 4
    %v66 = vadd.f32 %v63, %v65
    %v67 = vrot.slane %v66, 2
    %v68 = vadd.f32 %v66, %v67
    %v69 = vrot.slane %v68, 1
    %v70 = vadd.f32 %v68, %v69
    %v71 = vrot.slane %v64, 4
    %v72 = vadd.f32 %v64, %v71
    %v73 = vrot.slane %v72, 2
    %v74 = vadd.f32 %v72, %v73
    %v75 = vrot.slane %v74, 1
    %v76 = vadd.f32 %v74, %v75
    %v77 = vmax.f32 %v70, 1.0
    %v78 = vmax.f32 %v76, 1.0
    %v79 = vrcp.pop %v77
    %v80 = vmul.f32 %v77, %v79
    %v81 = vsub.f32 1.0, %v80
    %v82 = vmul.f32 %v79, %v81
    %v83 = vadd.f32 %v79, %v82
    %vm84 = vweird.f32 %v77
    %vm85 = vweird.f32 %v79
    %vm86 = vmor %vm84, %vm85
    %v87 = vsel %vm86, %v79, %v83
    %v88 = vand.u32 2147483647, %v77
    %vm89 = vcmp.eq.f32.partialorder %v88, 8.507059e+37
    %v90 = vand.u32 %v77, 2147483648
    %v91 = vor.u32 1.1754944e-38, %v90
    %v92 = vsel %vm89, %v91, %v87
    %v93 = vmul.f32 1.0, %v92
    %v94 = vrcp.pop %v78
    %v95 = vmul.f32 %v78, %v94
    %v96 = vsub.f32 1.0, %v95
    %v97 = vmul.f32 %v94, %v96
    %v98 = vadd.f32 %v94, %v97
    %vm99 = vweird.f32 %v78
    %vm100 = vweird.f32 %v94
    %vm101 = vmor %vm99, %vm100
    %v102 = vsel %vm101, %v94, %v98
    %v103 = vand.u32 2147483647, %v78
    %vm104 = vcmp.eq.f32.partialorder %v103, 8.507059e+37
    %v105 = vand.u32 %v78, 2147483648
    %v106 = vor.u32 1.1754944e-38, %v105
    %v107 = vsel %vm104, %v106, %v102
    %v108 = vmul.f32 1.0, %v107
    %v109 = vmul.f32 %v63, %v93
    %v110 = vmul.f32 %v64, %v108
    %v111 = vld [vmem:[%s4] sm:$0xff]
    %v112 = vld [vmem:[%s4 + $0x8] sm:$0xff]
    %v113 = vld [vmem:[%s4 + $0x10] sm:$0xff]
    %v114 = vld [vmem:[%s4 + $0x18] sm:$0xff]
    %v115 = vld [vmem:[%s4 + $0x20] sm:$0xff]
    %v116 = vld [vmem:[%s4 + $0x28] sm:$0xff]
    %v117 = vld [vmem:[%s4 + $0x30] sm:$0xff]
    %v118 = vld [vmem:[%s4 + $0x38] sm:$0xff]
    %v119 = vld [vmem:[%s4 + $0x40] sm:$0xff]
    %v120 = vld [vmem:[%s4 + $0x48] sm:$0xff]
    %vm121 = vcmask 64512
    %v123 = vsel %vm121, %v111, 0
    %v126 = vsel %vm121, %v112, 0
    %v129 = vsel %vm121, %v113, 0
    %v132 = vsel %vm121, %v114, 0
    %v135 = vsel %vm121, %v115, 0
    %137 = vmatpush.msra.mxu0 0.0
    %138 = vmatpush.msra.mxu0 0.0
    %139 = vmatpush.msra.mxu0 0.0
    %140 = vmatpush.msra.mxu0 0.0
    %141 = vmatpush.msra.mxu0 0.0
    %142 = vmatpush.msra.mxu0 0.0
    %143 = vmatpush.msra.mxu0 0.0
    %144 = vmatpush.msra.mxu0 0.0
    %145 = vmatpush.msra.mxu0 0.0
    %146 = vmatpush.msra.mxu0 0.0
    %147 = vmatpush.msra.mxu0 0.0
    %148 = vmatpush.msra.mxu0 0.0
    %149 = vmatpush.msra.mxu0 0.0
    %150 = vmatpush.msra.mxu0 0.0
    %151 = vmatpush.msra.mxu0 0.0
    %152 = vmatpush.msra.mxu0 %v109
    %153 = vmatmul.f32.gmra.mxu0 %v123
    %v154 = vpop.f32.mrf.mxu0
    %v155 = vadd.f32 0.0, %v154
    %156 = vmatmul.f32.gmra.mxu0 %v126
    %v157 = vpop.f32.mrf.mxu0
    %v158 = vadd.f32 0.0, %v157
    %159 = vmatmul.f32.gmra.mxu0 %v129
    %v160 = vpop.f32.mrf.mxu0
    %v161 = vadd.f32 0.0, %v160
    %162 = vmatmul.f32.gmra.mxu0 %v132
    %v163 = vpop.f32.mrf.mxu0
    %v164 = vadd.f32 0.0, %v163
    %165 = vmatmul.f32.gmra.mxu0 %v135
    %v166 = vpop.f32.mrf.mxu0
    %v167 = vadd.f32 0.0, %v166
    %168 = vdwg.mxu0
    %v170 = vsel %vm121, %v116, 0
    %v173 = vsel %vm121, %v117, 0
    %v176 = vsel %vm121, %v118, 0
    %v179 = vsel %vm121, %v119, 0
    %v182 = vsel %vm121, %v120, 0
    %184 = vmatpush.msra.mxu0 0.0
    %185 = vmatpush.msra.mxu0 0.0
    %186 = vmatpush.msra.mxu0 0.0
    %187 = vmatpush.msra.mxu0 0.0
    %188 = vmatpush.msra.mxu0 0.0
    %189 = vmatpush.msra.mxu0 0.0
    %190 = vmatpush.msra.mxu0 0.0
    %191 = vmatpush.msra.mxu0 0.0
    %192 = vmatpush.msra.mxu0 0.0
    %193 = vmatpush.msra.mxu0 0.0
    %194 = vmatpush.msra.mxu0 0.0
    %195 = vmatpush.msra.mxu0 0.0
    %196 = vmatpush.msra.mxu0 0.0
    %197 = vmatpush.msra.mxu0 0.0
    %198 = vmatpush.msra.mxu0 0.0
    %199 = vmatpush.msra.mxu0 %v110
    %200 = vmatmul.f32.gmra.mxu0 %v170
    %v201 = vpop.f32.mrf.mxu0
    %v202 = vadd.f32 0.0, %v201
    %203 = vmatmul.f32.gmra.mxu0 %v173
    %v204 = vpop.f32.mrf.mxu0
    %v205 = vadd.f32 0.0, %v204
    %206 = vmatmul.f32.gmra.mxu0 %v176
    %v207 = vpop.f32.mrf.mxu0
    %v208 = vadd.f32 0.0, %v207
    %209 = vmatmul.f32.gmra.mxu0 %v179
    %v210 = vpop.f32.mrf.mxu0
    %v211 = vadd.f32 0.0, %v210
    %212 = vmatmul.f32.gmra.mxu0 %v182
    %v213 = vpop.f32.mrf.mxu0
    %v214 = vadd.f32 0.0, %v213
    %215 = vdwg.mxu0
    %v216 = vadd.f32 %v30, %v40
    %v217 = vadd.f32 %v31, %v41
    %v218 = vadd.f32 %v32, %v42
    %v219 = vadd.f32 %v33, %v43
    %v220 = vadd.f32 %v34, %v44
    %v221 = vadd.f32 %v155, %v202
    %v222 = vadd.f32 %v158, %v205
    %v223 = vadd.f32 %v161, %v208
    %v224 = vadd.f32 %v164, %v211
    %v225 = vadd.f32 %v167, %v214
    %v226 = vadd.f32 %v216, %v221
    %v227 = vadd.f32 %v217, %v222
    %v228 = vadd.f32 %v218, %v223
    %v229 = vadd.f32 %v219, %v224
    %v230 = vadd.f32 %v220, %v225
    %v231 = vmul.f32 %v30, %v30
    %v232 = vmul.f32 %v31, %v31
    %v233 = vmul.f32 %v32, %v32
    %v234 = vmul.f32 %v33, %v33
    %v235 = vmul.f32 %v34, %v34
    %v236 = vmul.f32 %v40, %v40
    %v237 = vmul.f32 %v41, %v41
    %v238 = vmul.f32 %v42, %v42
    %v239 = vmul.f32 %v43, %v43
    %v240 = vmul.f32 %v44, %v44
    %v241 = vadd.f32 %v231, %v236
    %v242 = vadd.f32 %v232, %v237
    %v243 = vadd.f32 %v233, %v238
    %v244 = vadd.f32 %v234, %v239
    %v245 = vadd.f32 %v235, %v240
    %v246 = vmul.f32 %v155, %v155
    %v247 = vmul.f32 %v158, %v158
    %v248 = vmul.f32 %v161, %v161
    %v249 = vmul.f32 %v164, %v164
    %v250 = vmul.f32 %v167, %v167
    %v251 = vmul.f32 %v202, %v202
    %v252 = vmul.f32 %v205, %v205
    %v253 = vmul.f32 %v208, %v208
    %v254 = vmul.f32 %v211, %v211
    %v255 = vmul.f32 %v214, %v214
    %v256 = vadd.f32 %v246, %v251
    %v257 = vadd.f32 %v247, %v252
    %v258 = vadd.f32 %v248, %v253
    %v259 = vadd.f32 %v249, %v254
    %v260 = vadd.f32 %v250, %v255
    %v261 = vadd.f32 %v241, %v256
    %v262 = vadd.f32 %v242, %v257
    %v263 = vadd.f32 %v243, %v258
    %v264 = vadd.f32 %v244, %v259
    %v265 = vadd.f32 %v245, %v260
    %v266 = vmul.f32 %v226, %v226
    %v267 = vmul.f32 %v227, %v227
    %v268 = vmul.f32 %v228, %v228
    %v269 = vmul.f32 %v229, %v229
    %v270 = vmul.f32 %v230, %v230
    %v271 = vsub.f32 %v266, %v261
    %v272 = vsub.f32 %v267, %v262
    %v273 = vsub.f32 %v268, %v263
    %v274 = vsub.f32 %v269, %v264
    %v275 = vsub.f32 %v270, %v265
    %v276 = vlaneseq
    %v277 = vshrl.u32 %v276, 7
    %v278 = vadd.s32 %v277, 8
    %v279 = vadd.s32 %v277, 16
    %v280 = vadd.s32 %v277, 24
    %v281 = vadd.s32 %v277, 32
    %vm282 = vcmp.eq.s32.totalorder %v277, 0
    %vm283 = vcmp.eq.s32.totalorder %v278, 0
    %vm284 = vcmp.eq.s32.totalorder %v279, 0
    %vm285 = vcmp.eq.s32.totalorder %v280, 0
    %vm286 = vcmp.eq.s32.totalorder %v281, 0
    %v287 = vsel %vm282, 1, 0
    %v288 = vsel %vm283, 1, 0
    %v289 = vsel %vm284, 1, 0
    %v290 = vsel %vm285, 1, 0
    %v291 = vsel %vm286, 1, 0
    %v292 = vcvt.s32.f32 %v287
    %v293 = vcvt.s32.f32 %v288
    %v294 = vcvt.s32.f32 %v289
    %v295 = vcvt.s32.f32 %v290
    %v296 = vcvt.s32.f32 %v291
    %v297 = vmul.f32 %v292, %v226
    %v298 = vmul.f32 %v293, %v227
    %v299 = vmul.f32 %v294, %v228
    %v300 = vmul.f32 %v295, %v229
    %v301 = vmul.f32 %v296, %v230
    %v302 = vsub.f32 1.0, %v292
    %v303 = vsub.f32 1.0, %v293
    %v304 = vsub.f32 1.0, %v294
    %v305 = vsub.f32 1.0, %v295
    %v306 = vsub.f32 1.0, %v296
    %v307 = vmul.f32 %v302, 0.5
    %v308 = vmul.f32 %v303, 0.5
    %v309 = vmul.f32 %v304, 0.5
    %v310 = vmul.f32 %v305, 0.5
    %v311 = vmul.f32 %v306, 0.5
    %v312 = vmul.f32 %v307, %v271
    %v313 = vmul.f32 %v308, %v272
    %v314 = vmul.f32 %v309, %v273
    %v315 = vmul.f32 %v310, %v274
    %v316 = vmul.f32 %v311, %v275
    %v317 = vadd.f32 %v297, %v312
    %v318 = vadd.f32 %v298, %v313
    %v319 = vadd.f32 %v299, %v314
    %v320 = vadd.f32 %v300, %v315
    %v321 = vadd.f32 %v301, %v316
    %s322 = sld [smem:[#allocation2]]
    %v323 = vadd.f32 %v317, %v318
    %v324 = vadd.f32 %v323, %v319
    %v325 = vadd.f32 %v324, %v320
    %v326 = vadd.f32 %v325, %v321
    %v327 = vrot.slane %v326, 4
    %v328 = vadd.f32 %v326, %v327
    %v329 = vrot.slane %v328, 2
    %v330 = vadd.f32 %v328, %v329
    %v331 = vrot.slane %v330, 1
    %v332 = vadd.f32 %v330, %v331
    %v333 = vstv %s322
    %v334 = vadd.f32 %v333, %v332
    %v335 = vsub.f32 0.0, %v334
    %v336 = vmul.f32 %v335, 1.442695
    %v337 = vpow.pop %v336
    %v338 = vadd.f32 %v337, 1.0
    %v339 = vrcp.pop %v338
    %v340 = vmul.f32 %v338, %v339
    %v341 = vsub.f32 1.0, %v340
    %v342 = vmul.f32 %v339, %v341
    %v343 = vadd.f32 %v339, %v342
    %vm344 = vweird.f32 %v338
    %vm345 = vweird.f32 %v339
    %vm346 = vmor %vm344, %vm345
    %v347 = vsel %vm346, %v339, %v343
    %v348 = vand.u32 2147483647, %v338
    %vm349 = vcmp.eq.f32.partialorder %v348, 8.507059e+37
    %v350 = vand.u32 %v338, 2147483648
    %v351 = vor.u32 1.1754944e-38, %v350
    %v352 = vsel %vm349, %v351, %v347
    %v353 = vmul.f32 1.0, %v352
    %354 = vst [vmem:[#allocation3] sm:$0x1] %v353
    // Predicated region
    $region26: #{tpu_custom_call.1} parent=1 // pred_check
      _
    $region27: #{tpu_custom_call.1} parent=1 // pred_check_branch
      %356 = sbr.rel (0) target = $region29
    $region28: #{tpu_custom_call.1} parent=1 // pred_region
      %358 = vsyncadd [#allocation4], 0
      %s360 = sshll.u32 [#allocation3], 4
      %s361 = int_to_ptr.vmem [resolvable:$true] %s360
      %s362 = sshll.u32 %s6, 4
      %s363 = int_to_ptr.hbm [resolvable:$true] %s362
      %365 = dma.vmem_to_hbm [thread:$0]  %s361, 16, %s363, [#allocation4]
    $region29: #{tpu_custom_call.1} parent=1 // pred_fallthru
      _
    // Predicated region
    $region30: #{tpu_custom_call.1} parent=1 // pred_check
      _
    $region31: #{tpu_custom_call.1} parent=1 // pred_check_branch
      %367 = sbr.rel (0) target = $region33
    $region32: #{tpu_custom_call.1} parent=1 // pred_region
      %369 = dma.done [#allocation4], 16
    $region33: #{tpu_custom_call.1} parent=1 // pred_fallthru
      _
    %370 = vsyncpa [#allocation4], 1

</llo_original>
